<compile_context>
chip_gen: v7x
topology: tpu7x:2x2x1
jax: 0.10.0
libtpu: 0.0.40
codegen_flags: <defaults>
</compile_context>

<pallas_src>
import functools

import jax
import jax.numpy as jnp
from jax.experimental import pallas as pl
from jax.experimental.pallas import tpu as pltpu


# --------------------------------------------------------------------------
# Hardware-PRNG availability probe (run once).
# --------------------------------------------------------------------------
_HW_PRNG_OK = None


def _hw_prng_supported():
    global _HW_PRNG_OK
    if _HW_PRNG_OK is None:
        def probe(o_ref):
            pltpu.prng_seed(jnp.int32(0))
            bits = pltpu.prng_random_bits(o_ref.shape)
            if bits.dtype != jnp.int32:
                bits = pltpu.bitcast(bits, jnp.int32)
            o_ref[...] = bits
        try:
            jax.block_until_ready(
                pl.pallas_call(
                    probe,
                    out_shape=jax.ShapeDtypeStruct((8, 128), jnp.int32))())
            _HW_PRNG_OK = True
        except Exception:
            _HW_PRNG_OK = False
    return _HW_PRNG_OK


# --------------------------------------------------------------------------
# Kernel.
# --------------------------------------------------------------------------
def _ln_relu_dropout_kernel(seed_ref, a_ref, gamma_ref, beta_ref, x_ref, o_ref,
                            *, inv_h, eps, thresh_signed, apply_dropout,
                            use_hw_prng, split_f32):
    x = x_ref[...].astype(jnp.float32)          # (TM, W) packed logical rows
    a = a_ref[...]                              # (W, W) bf16 0/1 block-diagonal

    # Grouped sum broadcast to every lane of the group via one/two MXU matmuls.
    # The 0/1 matrix is exact in bf16, so a 2-term hi/lo split of the f32 input
    # recovers ~full f32 accuracy with only 2 single-pass matmuls.
    def group_sum(v):
        vh = v.astype(jnp.bfloat16)
        s = jnp.dot(vh, a, preferred_element_type=jnp.float32)
        if split_f32:
            vl = (v - vh.astype(jnp.float32)).astype(jnp.bfloat16)
            s = s + jnp.dot(vl, a, preferred_element_type=jnp.float32)
        return s

    mean = group_sum(x) * inv_h                 # per-logical-row mean (broadcast)
    cen = x - mean
    var = group_sum(cen * cen) * inv_h          # biased variance (torch LayerNorm)
    inv = jax.lax.rsqrt(var + eps)              # EUP, hides under VPU work

    # gamma/beta already tiled across the packed groups and pre-scaled by the
    # dropout 1/(1-p) factor (ReLU commutes with a positive scale).
    y = cen * inv * gamma_ref[...] + beta_ref[...]
    y = jnp.maximum(y, 0.0)

    if apply_dropout:
        if use_hw_prng:
            pltpu.prng_seed(seed_ref[0], pl.program_id(0))
            bits = pltpu.prng_random_bits(y.shape)
            if bits.dtype != jnp.int32:
                bits = pltpu.bitcast(bits, jnp.int32)
        else:
            # Portable fallback: trimmed murmur-style hash on the element index.
            tm, w = y.shape
            row = jax.lax.broadcasted_iota(jnp.int32, (tm, w), 0)
            col = jax.lax.broadcasted_iota(jnp.int32, (tm, w), 1)
            z = (pl.program_id(0) * jnp.int32(tm) + row) * jnp.int32(w) + col
            z = z ^ (seed_ref[0] * jnp.int32(-1640531527))      # 0x9E3779B9
            z = z * jnp.int32(-2048144789)                      # 0x85EBCA6B
            z = z ^ jax.lax.shift_right_logical(z, 15)
            z = z * jnp.int32(-1028477387)                      # 0xC2B2AE35
            z = z ^ jax.lax.shift_right_logical(z, 13)
            bits = z
        # keep  <=>  uniform_u32 >= drop_thresh ; done as a signed compare after
        # flipping the sign bit (monotone unsigned->signed map, v5e-safe).
        keep = (bits ^ jnp.int32(-(1 << 31))) >= jnp.int32(thresh_signed)
        y = jnp.where(keep, y, 0.0)

    o_ref[...] = y.astype(o_ref.dtype)


# --------------------------------------------------------------------------
# Wrapper.
# --------------------------------------------------------------------------
def fused_layernorm_relu_dropout(x, gamma, beta, *, dropout_prob, seed,
                                 eps=1e-5, row_tile=None):
    """y = Dropout(ReLU(LayerNorm(x))) over the last dim of x (training mode)."""
    orig_shape = x.shape
    H = int(orig_shape[-1])
    x2 = x.reshape(-1, H)
    N = int(x2.shape[0])

    p = float(dropout_prob)
    assert 0.0 <= p < 1.0, "dropout_prob must be in [0, 1)"
    apply_dropout = p > 0.0
    drop_thresh = min(int(round(p * (2.0 ** 32))), 2 ** 32 - 1)
    thresh_signed = drop_thresh - 2 ** 31
    inv_keep = 1.0 / (1.0 - p) if apply_dropout else 1.0

    # ---- lane-dense packing: G logical rows of width Hp per W-lane packed row.
    TARGET_W = 256                      # full MXU K/N utilisation on v6e/v7x
    if H <= TARGET_W and TARGET_W % H == 0:
        Hp, W = H, TARGET_W
    elif H % 128 == 0:
        Hp, W = H, H
    elif H < TARGET_W:
        Hp = int(pl.next_power_of_2(H))  # divides 256 -> still packable
        W = TARGET_W
    else:
        Hp = ((H + 127) // 128) * 128
        W = Hp
    G = W // Hp

    # ---- padding only when strictly needed (common case: pure reshape, 0 copies).
    # TODO(synk): when N % G != 0 this still materializes a padded copy of x;
    # a tiny pure-JAX tail for the last (< G) rows would avoid it.
    if N % G != 0:
        x2 = jnp.pad(x2, ((0, G - N % G), (0, 0)))
    if Hp != H:
        x2 = jnp.pad(x2, ((0, 0), (0, Hp - H)))   # keep stores lane-dense
    Np = x2.shape[0] // G
    xw = x2.reshape(Np, W)

    # ---- static 0/1 block-diagonal group matrix (bf16-exact) + folded affine.
    lane = jnp.arange(W, dtype=jnp.int32)
    grp = lane // Hp
    valid = (lane % Hp) < H
    amat = ((grp[:, None] == grp[None, :])
            & valid[:, None] & valid[None, :]).astype(jnp.bfloat16)

    def _fold(v):
        v = v.reshape(H).astype(jnp.float32) * inv_keep
        if Hp != H:
            v = jnp.concatenate([v, jnp.zeros((Hp - H,), jnp.float32)])
        return jnp.tile(v, (G,)).reshape(1, W)

    gamma_w = _fold(gamma)
    beta_w = _fold(beta)

    # ---- row tile from a VMEM budget; keep the grid >= 4 for v7x's two cores.
    itemsize = jnp.dtype(x.dtype).itemsize
    bytes_per_row = W * (4 * itemsize + 16)       # 4 pipeline bufs + ~16B/elt temps
    if row_tile is None:
        budget = 28 * 2 ** 20
        row_tile = max(8, min(8192, (budget // bytes_per_row) // 8 * 8))
    tm = min(int(row_tile), Np)
    if tm < Np:
        tm = max(8, (tm // 8) * 8)
    if Np >= 16 and pl.cdiv(Np, tm) < 4:
        tm = max(8, (pl.cdiv(Np, 4) + 7) // 8 * 8)
    num_tiles = pl.cdiv(Np, tm)

    footprint = tm * bytes_per_row + 2 * W * W + 8 * W
    vmem_limit = int(min(56 * 2 ** 20, max(footprint + 8 * 2 ** 20, 16 * 2 ** 20)))

    seed_arr = jnp.asarray([seed], dtype=jnp.int32)
    kernel = functools.partial(
        _ln_relu_dropout_kernel,
        inv_h=1.0 / H, eps=float(eps), thresh_signed=thresh_signed,
        apply_dropout=apply_dropout,
        use_hw_prng=bool(apply_dropout and _hw_prng_supported()),
        split_f32=(jnp.dtype(x.dtype) == jnp.dtype(jnp.float32)))

    cost = pl.CostEstimate(
        flops=8 * Np * W * W + 20 * Np * W,
        transcendentals=Np * W,
        bytes_accessed=2 * Np * W * itemsize + 2 * W * W + 8 * W)

    out = pl.pallas_call(
        kernel,
        out_shape=jax.ShapeDtypeStruct((Np, W), x.dtype),
        grid_spec=pltpu.PrefetchScalarGridSpec(
            num_scalar_prefetch=1,                      # seed -> SMEM
            grid=(num_tiles,),
            in_specs=[
                pl.BlockSpec((W, W), lambda i, s: (0, 0)),    # block-diag matrix
                pl.BlockSpec((1, W), lambda i, s: (0, 0)),    # gamma (scaled)
                pl.BlockSpec((1, W), lambda i, s: (0, 0)),    # beta  (scaled)
                pl.BlockSpec((tm, W), lambda i, s: (i, 0)),   # packed rows
            ],
            out_specs=pl.BlockSpec((tm, W), lambda i, s: (i, 0)),
        ),
        compiler_params=pltpu.CompilerParams(
            dimension_semantics=("parallel",),
            vmem_limit_bytes=vmem_limit),
        cost_estimate=cost,
    )(seed_arr, amat, gamma_w, beta_w, xw)

    out = out.reshape(Np * G, Hp)
    if Hp != H:
        out = out[:, :H]
    if Np * G != N:
        out = out[:N]
    return out.reshape(orig_shape)


# --------------------------------------------------------------------------
# Demo / checks.
# --------------------------------------------------------------------------
if __name__ == "__main__":
    # Shapes consistent with GAT_model's in_conv_tail:
    # x is (num_nodes, hidden_features * num_heads) after GATConv(...).flatten(1).
    num_nodes, hidden_features, num_heads = 256, 8, 4
    H = hidden_features * num_heads                  # 32
    dropout_prob = 0.5                               # GAT_model default

    key = jax.random.PRNGKey(0)
    kx, kg, kb = jax.random.split(key, 3)
    x = jax.random.normal(kx, (num_nodes, H), dtype=jnp.float32)
    gamma = 1.0 + 0.1 * jax.random.normal(kg, (H,), dtype=jnp.float32)
    beta = 0.1 * jax.random.normal(kb, (H,), dtype=jnp.float32)

    out = fused_layernorm_relu_dropout(
        x, gamma, beta, dropout_prob=dropout_prob, seed=0)
    out = jax.block_until_ready(out)

    # --- checks -----------------------------------------------------------
    assert out.shape == x.shape and out.dtype == x.dtype
    assert bool(jnp.all(out >= 0.0))                 # ReLU then mask-to-zero

    mean = jnp.mean(x, axis=-1, keepdims=True)
    var = jnp.mean((x - mean) ** 2, axis=-1, keepdims=True)
    ref = jnp.maximum((x - mean) * jax.lax.rsqrt(var + 1e-5) * gamma + beta, 0.0)

    # Deterministic part must match pure JAX on kept elements:
    # out == ref / (1 - p) wherever the dropout mask kept the element.
    kept = out > 0.0
    assert bool(jnp.allclose(jnp.where(kept, out, 0.0),
                             jnp.where(kept, ref / (1.0 - dropout_prob), 0.0),
                             atol=2e-5, rtol=2e-5))

    # Dropout rate sanity on clearly-positive entries (p=0.5 -> wide band).
    pos = ref > 1e-6
    frac_dropped = float(jnp.sum(jnp.where(pos, out == 0.0, False)) /
                         jnp.maximum(jnp.sum(pos), 1))
    assert 0.2 < frac_dropped < 0.8

    # p = 0 path: pure LayerNorm + ReLU must match the reference exactly.
    out_nodrop = jax.block_until_ready(fused_layernorm_relu_dropout(
        x, gamma, beta, dropout_prob=0.0, seed=0))
    assert bool(jnp.allclose(out_nodrop, ref, atol=2e-5, rtol=2e-5))

    # Odd node count: exercises the partial-last-block (no-padding) path.
    x_odd = jax.random.normal(jax.random.PRNGKey(1), (200, H), dtype=jnp.float32)
    mo = jnp.mean(x_odd, axis=-1, keepdims=True)
    vo = jnp.mean((x_odd - mo) ** 2, axis=-1, keepdims=True)
    ref_o = jnp.maximum((x_odd - mo) * jax.lax.rsqrt(vo + 1e-5) * gamma + beta, 0.0)
    out_o = jax.block_until_ready(fused_layernorm_relu_dropout(
        x_odd, gamma, beta, dropout_prob=0.0, seed=3))
    assert bool(jnp.allclose(out_o, ref_o, atol=2e-5, rtol=2e-5))

    print("KERNEL_OK")
</pallas_src>

<mosaic_0001>
module attributes {stable_mosaic.version = 11 : i64} {
  func.func @_ln_relu_dropout_kernel(%arg0: i32, %arg1: memref<1xi32, #tpu.memory_space<smem>>, %arg2: memref<256x256xbf16, #tpu.memory_space<vmem>>, %arg3: memref<1x256xf32, #tpu.memory_space<vmem>>, %arg4: memref<1x256xf32, #tpu.memory_space<vmem>>, %arg5: memref<8x256xf32, #tpu.memory_space<vmem>>, %arg6: memref<8x256xf32, #tpu.memory_space<vmem>>) attributes {dimension_semantics = [#tpu.dimension_semantics<parallel>], iteration_bounds = array<i64: 4>, scalar_prefetch = 1 : i64, scratch_operands = 0 : i64, tpu.core_type = #tpu.core_type<tc>, window_params = [{pipeline_mode = #tpu.pipeline_mode<synchronous>, transform_indices = @transform_0, window_bounds = array<i64: 256, 256>}, {pipeline_mode = #tpu.pipeline_mode<synchronous>, transform_indices = @transform_1, window_bounds = array<i64: 1, 256>}, {pipeline_mode = #tpu.pipeline_mode<synchronous>, transform_indices = @transform_2, window_bounds = array<i64: 1, 256>}, {transform_indices = @transform_3, window_bounds = array<i64: 8, 256>}, {transform_indices = @transform_4, window_bounds = array<i64: 8, 256>}]} {
    %c0 = arith.constant 0 : index
    %c0_0 = arith.constant 0 : index
    %0 = vector.load %arg5[%c0, %c0_0] : memref<8x256xf32, #tpu.memory_space<vmem>>, vector<8x256xf32>
    %c0_1 = arith.constant 0 : index
    %c0_2 = arith.constant 0 : index
    %1 = vector.load %arg2[%c0_1, %c0_2] : memref<256x256xbf16, #tpu.memory_space<vmem>>, vector<256x256xbf16>
    %2 = arith.truncf %0 : vector<8x256xf32> to vector<8x256xbf16>
    %cst = arith.constant dense<0.000000e+00> : vector<8x256xf32>
    %3 = tpu.matmul %2, %1, %cst {dimension_numbers = #tpu.dot_dimension_numbers<[1], [0], [0], [1], [0, 0, 1, 1], [], []>} : vector<8x256xbf16>, vector<256x256xbf16>, vector<8x256xf32> -> vector<8x256xf32>
    %4 = arith.extf %2 : vector<8x256xbf16> to vector<8x256xf32>
    %5 = arith.subf %0, %4 : vector<8x256xf32>
    %6 = arith.truncf %5 : vector<8x256xf32> to vector<8x256xbf16>
    %cst_3 = arith.constant dense<0.000000e+00> : vector<8x256xf32>
    %7 = tpu.matmul %6, %1, %cst_3 {dimension_numbers = #tpu.dot_dimension_numbers<[1], [0], [0], [1], [0, 0, 1, 1], [], []>} : vector<8x256xbf16>, vector<256x256xbf16>, vector<8x256xf32> -> vector<8x256xf32>
    %8 = arith.addf %3, %7 : vector<8x256xf32>
    %cst_4 = arith.constant 3.125000e-02 : f32
    %9 = vector.broadcast %cst_4 : f32 to vector<8x256xf32>
    %10 = arith.mulf %8, %9 : vector<8x256xf32>
    %11 = arith.subf %0, %10 : vector<8x256xf32>
    %12 = arith.mulf %11, %11 : vector<8x256xf32>
    %13 = arith.truncf %12 : vector<8x256xf32> to vector<8x256xbf16>
    %cst_5 = arith.constant dense<0.000000e+00> : vector<8x256xf32>
    %14 = tpu.matmul %13, %1, %cst_5 {dimension_numbers = #tpu.dot_dimension_numbers<[1], [0], [0], [1], [0, 0, 1, 1], [], []>} : vector<8x256xbf16>, vector<256x256xbf16>, vector<8x256xf32> -> vector<8x256xf32>
    %15 = arith.extf %13 : vector<8x256xbf16> to vector<8x256xf32>
    %16 = arith.subf %12, %15 : vector<8x256xf32>
    %17 = arith.truncf %16 : vector<8x256xf32> to vector<8x256xbf16>
    %cst_6 = arith.constant dense<0.000000e+00> : vector<8x256xf32>
    %18 = tpu.matmul %17, %1, %cst_6 {dimension_numbers = #tpu.dot_dimension_numbers<[1], [0], [0], [1], [0, 0, 1, 1], [], []>} : vector<8x256xbf16>, vector<256x256xbf16>, vector<8x256xf32> -> vector<8x256xf32>
    %19 = arith.addf %14, %18 : vector<8x256xf32>
    %cst_7 = arith.constant 3.125000e-02 : f32
    %20 = vector.broadcast %cst_7 : f32 to vector<8x256xf32>
    %21 = arith.mulf %19, %20 : vector<8x256xf32>
    %cst_8 = arith.constant 9.99999974E-6 : f32
    %22 = vector.broadcast %cst_8 : f32 to vector<8x256xf32>
    %23 = arith.addf %21, %22 : vector<8x256xf32>
    %24 = math.rsqrt %23 : vector<8x256xf32>
    %25 = arith.mulf %11, %24 : vector<8x256xf32>
    %c0_9 = arith.constant 0 : index
    %c0_10 = arith.constant 0 : index
    %26 = vector.load %arg3[%c0_9, %c0_10] : memref<1x256xf32, #tpu.memory_space<vmem>>, vector<1x256xf32>
    %27 = vector.broadcast %26 : vector<1x256xf32> to vector<8x256xf32>
    %28 = arith.mulf %25, %27 : vector<8x256xf32>
    %c0_11 = arith.constant 0 : index
    %c0_12 = arith.constant 0 : index
    %29 = vector.load %arg4[%c0_11, %c0_12] : memref<1x256xf32, #tpu.memory_space<vmem>>, vector<1x256xf32>
    %30 = vector.broadcast %29 : vector<1x256xf32> to vector<8x256xf32>
    %31 = arith.addf %28, %30 : vector<8x256xf32>
    %cst_13 = arith.constant 0.000000e+00 : f32
    %32 = vector.broadcast %cst_13 : f32 to vector<8x256xf32>
    %33 = arith.maximumf %31, %32 : vector<8x256xf32>
    %34 = tpu.iota {dimensions = array<i32: 0>} : vector<8x256xi32>
    %35 = tpu.iota {dimensions = array<i32: 1>} : vector<8x256xi32>
    %c8_i32 = arith.constant 8 : i32
    %36 = arith.muli %arg0, %c8_i32 : i32
    %37 = vector.broadcast %36 : i32 to vector<8x256xi32>
    %38 = arith.addi %37, %34 : vector<8x256xi32>
    %c256_i32 = arith.constant 256 : i32
    %39 = vector.broadcast %c256_i32 : i32 to vector<8x256xi32>
    %40 = arith.muli %38, %39 : vector<8x256xi32>
    %41 = arith.addi %40, %35 : vector<8x256xi32>
    %c0_14 = arith.constant 0 : index
    %42 = memref.load %arg1[%c0_14] : memref<1xi32, #tpu.memory_space<smem>>
    %c-1640531527_i32 = arith.constant -1640531527 : i32
    %43 = arith.muli %42, %c-1640531527_i32 : i32
    %44 = vector.broadcast %43 : i32 to vector<8x256xi32>
    %45 = arith.xori %41, %44 : vector<8x256xi32>
    %c-2048144789_i32 = arith.constant -2048144789 : i32
    %46 = vector.broadcast %c-2048144789_i32 : i32 to vector<8x256xi32>
    %47 = arith.muli %45, %46 : vector<8x256xi32>
    %c15_i32 = arith.constant 15 : i32
    %48 = vector.broadcast %c15_i32 : i32 to vector<8x256xi32>
    %49 = arith.shrui %47, %48 : vector<8x256xi32>
    %50 = arith.xori %47, %49 : vector<8x256xi32>
    %c-1028477387_i32 = arith.constant -1028477387 : i32
    %51 = vector.broadcast %c-1028477387_i32 : i32 to vector<8x256xi32>
    %52 = arith.muli %50, %51 : vector<8x256xi32>
    %c13_i32 = arith.constant 13 : i32
    %53 = vector.broadcast %c13_i32 : i32 to vector<8x256xi32>
    %54 = arith.shrui %52, %53 : vector<8x256xi32>
    %55 = arith.xori %52, %54 : vector<8x256xi32>
    %c-2147483648_i32 = arith.constant -2147483648 : i32
    %56 = vector.broadcast %c-2147483648_i32 : i32 to vector<8x256xi32>
    %57 = arith.xori %55, %56 : vector<8x256xi32>
    %c0_i32 = arith.constant 0 : i32
    %58 = vector.broadcast %c0_i32 : i32 to vector<8x256xi32>
    %59 = arith.cmpi sge, %57, %58 : vector<8x256xi32>
    %cst_15 = arith.constant 0.000000e+00 : f32
    %60 = vector.broadcast %cst_15 : f32 to vector<8x256xf32>
    %61 = arith.select %59, %33, %60 : vector<8x256xi1>, vector<8x256xf32>
    %c0_16 = arith.constant 0 : index
    %c0_17 = arith.constant 0 : index
    %62 = vector.load %arg6[%c0_16, %c0_17] : memref<8x256xf32, #tpu.memory_space<vmem>>, vector<8x256xf32>
    tpu.vector_store %arg6[%c0_16, %c0_17], %61 {strides = array<i32>} : memref<8x256xf32, #tpu.memory_space<vmem>>, vector<8x256xf32>,
    return
  }
  func.func @transform_0(%arg0: i32, %arg1: memref<1xi32, #tpu.memory_space<smem>>) -> (i32, i32) {
    %c0_i32 = arith.constant 0 : i32
    %c0_i32_0 = arith.constant 0 : i32
    %c0_i32_1 = arith.constant 0 : i32
    return %c0_i32, %c0_i32_0 : i32, i32
  }
  func.func @transform_1(%arg0: i32, %arg1: memref<1xi32, #tpu.memory_space<smem>>) -> (i32, i32) {
    %c0_i32 = arith.constant 0 : i32
    %c0_i32_0 = arith.constant 0 : i32
    %c0_i32_1 = arith.constant 0 : i32
    return %c0_i32, %c0_i32_0 : i32, i32
  }
  func.func @transform_2(%arg0: i32, %arg1: memref<1xi32, #tpu.memory_space<smem>>) -> (i32, i32) {
    %c0_i32 = arith.constant 0 : i32
    %c0_i32_0 = arith.constant 0 : i32
    %c0_i32_1 = arith.constant 0 : i32
    return %c0_i32, %c0_i32_0 : i32, i32
  }
  func.func @transform_3(%arg0: i32, %arg1: memref<1xi32, #tpu.memory_space<smem>>) -> (i32, i32) {
    %c0_i32 = arith.constant 0 : i32
    %c0_i32_0 = arith.constant 0 : i32
    return %arg0, %c0_i32 : i32, i32
  }
  func.func @transform_4(%arg0: i32, %arg1: memref<1xi32, #tpu.memory_space<smem>>) -> (i32, i32) {
    %c0_i32 = arith.constant 0 : i32
    %c0_i32_0 = arith.constant 0 : i32
    return %arg0, %c0_i32 : i32, i32
  }
}

</mosaic_0001>

<llo_original>
// kernel: tpu_custom_call.1
$region0: #{tpu_custom_call.1}
  #allocation0 [shape = 'u32[]', space=smem, size = 0x4, offset = 0x4, fixed_abs, tag = 'smem constant byte address 0x4 - core index']
  #allocation1 [shape = 'u32[144,128]{1,0:T(1,128)}', space=vmem, size = 0x12000, scoped, tag = 'internal scratch']
  #allocation2 [shape = 's32[1]{0}', space=sflag, size = 0x4, scoped, tag = 'scoped memory for tpu_custom_call.1']
  #allocation3 [shape = 's32[1]{0:T(128)S(6)}', space=smem, size = 0x200, scoped, tag = 'prefetched SMEM operand 0']
  %s0 = inlined_call_operand.<no memory space> [shape: s32[1], index: 0, kind: input, shape index: {}]
  %s1 = inlined_call_operand.hbm [shape: bf16[256,256], index: 1, kind: input, shape index: {}]
  %s2 = inlined_call_operand.vmem [shape: f32[1,256], index: 2, kind: input, shape index: {}]
  %s3 = inlined_call_operand.vmem [shape: f32[1,256], index: 3, kind: input, shape index: {}]
  %s4 = inlined_call_operand.hbm [shape: f32[32,256], index: 4, kind: input, shape index: {}]
  %s5 = inlined_call_operand.hbm [shape: f32[32,256], index: 5, kind: output, shape index: {}]
  %s6 = sld [smem:[#allocation0]]
  $region57: #{tpu_custom_call.1} parent=0
    _
  %s8 = ssub.s32 1, %s6
  %s9 = scalar_select 0, %s8, %s6
  %10 = sst [smem:[#allocation3]] %s0
  $region1: #{tpu_custom_call.1} parent=0
    #allocation4 [shape = 'u8[131072]{0}', space=vmem, size = 0x20000, scoped, tag = 'input window, operand 1, single buffered']
    #allocation5 [shape = 's32[2]{0}', space=sflag, size = 0x8, scoped, tag = 'scoped memory for tpu_custom_call.1']
    #allocation6 [shape = 's32[2]{0}', space=sflag, size = 0x8, scoped, tag = 'scoped memory for tpu_custom_call.1']
    #allocation7 [shape = 'u8[16384]{0}', space=vmem, size = 0x4000, scoped, tag = 'input window, operand 4']
    #allocation8 [shape = 's32[2]{0}', space=sflag, size = 0x8, scoped, tag = 'scoped memory for tpu_custom_call.1']
    #allocation9 [shape = 'u8[16384]{0}', space=vmem, size = 0x4000, scoped, tag = 'output window, operand 0']
    %11 = vsyncpa [#allocation5], 0
    %12 = vsyncpa [#allocation8], 0
    %s13 = scalar_lea.sflag [#allocation8], 1
    %14 = vsyncpa %s13, 0
    %15 = vsyncpa [#allocation6], 0
    %s16 = scalar_lea.sflag [#allocation6], 1
    %17 = vsyncpa %s16, 0
    loop: start=0, step=1, limit=6
    $region2: #{tpu_custom_call.1} parent=1 // loop_pre_header
      _
    $region3: #{tpu_custom_call.1} parent=1 // loop_header
      %s19 = sphi 0, %s23
      %p20 = scmp.ge.s32.totalorder %s19, 6
      %s27 = sphi 0, %s27
      %s29 = sphi 0, %s27
      %s30 = sphi 0, %s29
      %s44 = sphi 0, %s30
      %s48 = sphi 0, %s48
      %s50 = sphi 0, %s48
      %s51 = sphi 0, %s50
      %s65 = sphi 0, %s51
      %s69 = sphi 0, %s69
      %s71 = sphi 0, %s69
      %s72 = sphi 0, %s71
      %s86 = sphi 0, %s72
      %s92 = sphi 0, %s94
      %s95 = sphi 0, %s92
      %s96 = sphi 0, %s95
      %s112 = sphi 0, %s96
      %s118 = sphi 0, %s120
      %s121 = sphi 0, %s118
      %s122 = sphi 0, %s121
      %s138 = sphi 0, %s122
    $region4: #{tpu_custom_call.1} parent=1 // loop_header_branch
      %22 = sbr.rel (%p20) target = $region8
    $region5: #{tpu_custom_call.1} parent=1 // loop_body
      %s24 = ssub.s32 %s19, 1
      %s25 = ssub.s32 %s19, 2
      %s26 = sadd.s32 %s19, 1
      %s28 = sadd.s32 %s27, 1
      %p31 = scmp.eq.s32.totalorder %s19, 3
      %p32 = scmp.ne.s32.totalorder %s27, %s29
      %p33 = scmp.eq.s32.totalorder %s19, 0
      %p34 = por %p32, %p33
      %p35 = scmp.ne.s32.totalorder %s27, %s29
      %p36 = scmp.eq.s32.totalorder %s24, 3
      %p37 = por %p35, %p36
      %p38 = scmp.ne.s32.totalorder %s29, %s30
      %p39 = scmp.eq.s32.totalorder %s24, 0
      %p40 = por %p38, %p39
      %p41 = scmp.ne.s32.totalorder %s29, %s30
      %p42 = scmp.eq.s32.totalorder %s25, 3
      %p43 = por %p41, %p42
      %p45 = scmp.ne.s32.totalorder %s30, %s44
      %p46 = scmp.eq.s32.totalorder %s25, 0
      %p47 = por %p45, %p46
      %s49 = sadd.s32 %s48, 1
      %p52 = scmp.eq.s32.totalorder %s19, 3
      %p53 = scmp.ne.s32.totalorder %s48, %s50
      %p54 = scmp.eq.s32.totalorder %s19, 0
      %p55 = por %p53, %p54
      %p56 = scmp.ne.s32.totalorder %s48, %s50
      %p57 = scmp.eq.s32.totalorder %s24, 3
      %p58 = por %p56, %p57
      %p59 = scmp.ne.s32.totalorder %s50, %s51
      %p60 = scmp.eq.s32.totalorder %s24, 0
      %p61 = por %p59, %p60
      %p62 = scmp.ne.s32.totalorder %s50, %s51
      %p63 = scmp.eq.s32.totalorder %s25, 3
      %p64 = por %p62, %p63
      %p66 = scmp.ne.s32.totalorder %s51, %s65
      %p67 = scmp.eq.s32.totalorder %s25, 0
      %p68 = por %p66, %p67
      %s70 = sadd.s32 %s69, 1
      %p73 = scmp.eq.s32.totalorder %s19, 3
      %p74 = scmp.ne.s32.totalorder %s69, %s71
      %p75 = scmp.eq.s32.totalorder %s19, 0
      %p76 = por %p74, %p75
      %p77 = scmp.ne.s32.totalorder %s69, %s71
      %p78 = scmp.eq.s32.totalorder %s24, 3
      %p79 = por %p77, %p78
      %p80 = scmp.ne.s32.totalorder %s71, %s72
      %p81 = scmp.eq.s32.totalorder %s24, 0
      %p82 = por %p80, %p81
      %p83 = scmp.ne.s32.totalorder %s71, %s72
      %p84 = scmp.eq.s32.totalorder %s25, 3
      %p85 = por %p83, %p84
      %p87 = scmp.ne.s32.totalorder %s72, %s86
      %p88 = scmp.eq.s32.totalorder %s25, 0
      %p89 = por %p87, %p88
      %s90 = ssub.s32 %s19, %s26
      %p91 = scmp.eq.s32.totalorder %s90, 0
      %s93 = sadd.s32 %s92, 1
      %s94 = scalar_select %p91, %s92, %s93
      %p97 = pneg %p91
      %p98 = scmp.eq.s32.totalorder %s19, 3
      %p99 = por %p97, %p98
      %p100 = scmp.ne.s32.totalorder %s92, %s95
      %p101 = scmp.eq.s32.totalorder %s19, 0
      %p102 = por %p100, %p101
      %p103 = scmp.ne.s32.totalorder %s92, %s95
      %p104 = scmp.eq.s32.totalorder %s24, 3
      %p105 = por %p103, %p104
      %p106 = scmp.ne.s32.totalorder %s95, %s96
      %p107 = scmp.eq.s32.totalorder %s24, 0
      %p108 = por %p106, %p107
      %p109 = scmp.ne.s32.totalorder %s95, %s96
      %p110 = scmp.eq.s32.totalorder %s25, 3
      %p111 = por %p109, %p110
      %p113 = scmp.ne.s32.totalorder %s96, %s112
      %p114 = scmp.eq.s32.totalorder %s25, 0
      %p115 = por %p113, %p114
      %s116 = ssub.s32 %s19, %s26
      %p117 = scmp.eq.s32.totalorder %s116, 0
      %s119 = sadd.s32 %s118, 1
      %s120 = scalar_select %p117, %s118, %s119
      %p123 = pneg %p117
      %p124 = scmp.eq.s32.totalorder %s19, 3
      %p125 = por %p123, %p124
      %p126 = scmp.ne.s32.totalorder %s118, %s121
      %p127 = scmp.eq.s32.totalorder %s19, 0
      %p128 = por %p126, %p127
      %p129 = scmp.ne.s32.totalorder %s118, %s121
      %p130 = scmp.eq.s32.totalorder %s24, 3
      %p131 = por %p129, %p130
      %p132 = scmp.ne.s32.totalorder %s121, %s122
      %p133 = scmp.eq.s32.totalorder %s24, 0
      %p134 = por %p132, %p133
      %p135 = scmp.ne.s32.totalorder %s121, %s122
      %p136 = scmp.eq.s32.totalorder %s25, 3
      %p137 = por %p135, %p136
      %p139 = scmp.ne.s32.totalorder %s122, %s138
      %p140 = scmp.eq.s32.totalorder %s25, 0
      %p141 = por %p139, %p140
      %p142 = scmp.le.s32.totalorder 1, %s19
      %p143 = scmp.lt.s32.totalorder %s19, 5
      %p144 = pnand %p142, %p143
      %p145 = pneg %p144
      // Predicated region
      $region9: #{tpu_custom_call.1} parent=5 // pred_check
        _
      $region10: #{tpu_custom_call.1} parent=5 // pred_check_branch
        %147 = sbr.rel (%p144) target = $region12
      $region11: #{tpu_custom_call.1} parent=5 // pred_region
        %s148 = ssub.s32 %s19, 1
        // Predicated region
        $region13: #{tpu_custom_call.1} parent=11 // pred_check
          %p149 = pneg %p40
        $region14: #{tpu_custom_call.1} parent=11 // pred_check_branch
          %151 = sbr.rel (%p149) target = $region16
        $region15: #{tpu_custom_call.1} parent=11 // pred_region
          %s153 = ssub.s32 4096, 4096
          %154 = vsyncadd [#allocation5], %s153
          %s155 = sshll.u32 [#allocation4], 4
          %s156 = int_to_ptr.vmem [resolvable:$true] %s155
          %161 = dma.hbm_to_vmem [thread:$0]  %s1, 4096, %s156, [#allocation5], 128, 128, 8
        $region16: #{tpu_custom_call.1} parent=11 // pred_fallthru
          _
        // Predicated region
        $region17: #{tpu_custom_call.1} parent=11 // pred_check
          %p162 = pneg %p61
        $region18: #{tpu_custom_call.1} parent=11 // pred_check_branch
          %164 = sbr.rel (%p162) target = $region20
        $region19: #{tpu_custom_call.1} parent=11 // pred_region
          _
        $region20: #{tpu_custom_call.1} parent=11 // pred_fallthru
          _
        // Predicated region
        $region21: #{tpu_custom_call.1} parent=11 // pred_check
          %p165 = pneg %p82
        $region22: #{tpu_custom_call.1} parent=11 // pred_check_branch
          %167 = sbr.rel (%p165) target = $region24
        $region23: #{tpu_custom_call.1} parent=11 // pred_region
          _
        $region24: #{tpu_custom_call.1} parent=11 // pred_fallthru
          _
      $region12: #{tpu_custom_call.1} parent=5 // pred_fallthru
        _
      %p168 = scmp.lt.s32.totalorder %s19, 4
      // Predicated region
      $region25: #{tpu_custom_call.1} parent=5 // pred_check
        %p169 = pneg %p168
      $region26: #{tpu_custom_call.1} parent=5 // pred_check_branch
        %171 = sbr.rel (%p169) target = $region28
      $region27: #{tpu_custom_call.1} parent=5 // pred_region
        // Predicated region
        $region29: #{tpu_custom_call.1} parent=27 // pred_check
          %p172 = pneg %p102
        $region30: #{tpu_custom_call.1} parent=27 // pred_check_branch
          %174 = sbr.rel (%p172) target = $region32
        $region31: #{tpu_custom_call.1} parent=27 // pred_region
          %s175 = sand.u32 %s92, 1
          %s176 = scalar_lea.sflag [#allocation8], %s175
          %s177 = sand.u32 %s92, 1
          %s178 = smul.addr %s177, 16
          %s179 = scalar_lea.vmem [#allocation7], %s178
          %s181 = ssub.s32 256, 256
          %182 = vsyncadd %s176, %s181
          %s183 = smul.addr %s19, 2
          %s184 = smul.addr %s183, 128
          %s185 = scalar_lea.hbm %s4, %s184
          %s187 = sshll.u32 %s179, 4
          %s188 = int_to_ptr.vmem [resolvable:$true] %s187
          %190 = dma.hbm_to_vmem [thread:$0]  %s185, 256, %s188, %s176
        $region32: #{tpu_custom_call.1} parent=27 // pred_fallthru
          _
      $region28: #{tpu_custom_call.1} parent=5 // pred_fallthru
        _
      %p191 = scmp.le.s32.totalorder 1, %s19
      %p192 = scmp.lt.s32.totalorder %s19, 5
      %p193 = pnand %p191, %p192
      %p194 = pneg %p193
      // Predicated region
      $region33: #{tpu_custom_call.1} parent=5 // pred_check
        _
      $region34: #{tpu_custom_call.1} parent=5 // pred_check_branch
        %196 = sbr.rel (%p193) target = $region36
      $region35: #{tpu_custom_call.1} parent=5 // pred_region
        %s197 = ssub.s32 %s19, 1
        // Predicated region
        $region37: #{tpu_custom_call.1} parent=35 // pred_check
          %p198 = pneg %p40
        $region38: #{tpu_custom_call.1} parent=35 // pred_check_branch
          %200 = sbr.rel (%p198) target = $region40
        $region39: #{tpu_custom_call.1} parent=35 // pred_region
          %201 = dma.done [#allocation5], 4096
        $region40: #{tpu_custom_call.1} parent=35 // pred_fallthru
          _
        %s202 = sand.u32 %s95, 1
        %s203 = scalar_lea.sflag [#allocation8], %s202
        %s204 = sand.u32 %s95, 1
        %s205 = smul.addr %s204, 16
        %s206 = scalar_lea.vmem [#allocation7], %s205
        // Predicated region
        $region41: #{tpu_custom_call.1} parent=35 // pred_check
          %p207 = pneg %p108
        $region42: #{tpu_custom_call.1} parent=35 // pred_check_branch
          %209 = sbr.rel (%p207) target = $region44
        $region43: #{tpu_custom_call.1} parent=35 // pred_region
          %210 = dma.done %s203, 256
        $region44: #{tpu_custom_call.1} parent=35 // pred_fallthru
          _
        %p211 = pneg %p40
        %p212 = pneg %p37
        %p213 = pneg %p61
        %p214 = pneg %p58
        %p215 = pneg %p82
        %p216 = pneg %p79
        %s217 = sand.u32 %s95, 1
        %s218 = scalar_lea.sflag [#allocation8], %s217
        %s219 = sand.u32 %s95, 1
        %s220 = smul.addr %s219, 16
        %s221 = scalar_lea.vmem [#allocation7], %s220
        %p222 = pneg %p108
        %p223 = pneg %p105
        %p224 = pneg %p134
        %p225 = pneg %p131
        %s226 = sand.u32 %s121, 1
        %s227 = scalar_lea.sflag [#allocation6], %s226
        %s228 = sand.u32 %s121, 1
        %s229 = smul.addr %s228, 16
        %s230 = scalar_lea.vmem [#allocation9], %s229
        %v231 = vld [vmem:[%s206] sm:$0xff]
        %v232 = vld [vmem:[%s206 + $0x8] sm:$0xff]
        %v233 = vld [vmem:[#allocation4] sm:$0xff]
        %v234 = vld [vmem:[#allocation4 + $0x8] sm:$0xff]
        %v235 = vld [vmem:[#allocation4 + $0x10] sm:$0xff]
        %v236 = vld [vmem:[#allocation4 + $0x18] sm:$0xff]
        %v237 = vld [vmem:[#allocation4 + $0x20] sm:$0xff]
        %v238 = vld [vmem:[#allocation4 + $0x28] sm:$0xff]
        %v239 = vld [vmem:[#allocation4 + $0x30] sm:$0xff]
        %v240 = vld [vmem:[#allocation4 + $0x38] sm:$0xff]
        %v241 = vld [vmem:[#allocation4 + $0x40] sm:$0xff]
        %v242 = vld [vmem:[#allocation4 + $0x48] sm:$0xff]
        %v243 = vld [vmem:[#allocation4 + $0x50] sm:$0xff]
        %v244 = vld [vmem:[#allocation4 + $0x58] sm:$0xff]
        %v245 = vld [vmem:[#allocation4 + $0x60] sm:$0xff]
        %v246 = vld [vmem:[#allocation4 + $0x68] sm:$0xff]
        %v247 = vld [vmem:[#allocation4 + $0x70] sm:$0xff]
        %v248 = vld [vmem:[#allocation4 + $0x78] sm:$0xff]
        %v249 = vld [vmem:[#allocation4 + $0x80] sm:$0xff]
        %v250 = vld [vmem:[#allocation4 + $0x88] sm:$0xff]
        %v251 = vld [vmem:[#allocation4 + $0x90] sm:$0xff]
        %v252 = vld [vmem:[#allocation4 + $0x98] sm:$0xff]
        %v253 = vld [vmem:[#allocation4 + $0xa0] sm:$0xff]
        %v254 = vld [vmem:[#allocation4 + $0xa8] sm:$0xff]
        %v255 = vld [vmem:[#allocation4 + $0xb0] sm:$0xff]
        %v256 = vld [vmem:[#allocation4 + $0xb8] sm:$0xff]
        %v257 = vld [vmem:[#allocation4 + $0xc0] sm:$0xff]
        %v258 = vld [vmem:[#allocation4 + $0xc8] sm:$0xff]
        %v259 = vld [vmem:[#allocation4 + $0xd0] sm:$0xff]
        %v260 = vld [vmem:[#allocation4 + $0xd8] sm:$0xff]
        %v261 = vld [vmem:[#allocation4 + $0xe0] sm:$0xff]
        %v262 = vld [vmem:[#allocation4 + $0xe8] sm:$0xff]
        %v263 = vld [vmem:[#allocation4 + $0xf0] sm:$0xff]
        %v264 = vld [vmem:[#allocation4 + $0xf8] sm:$0xff]
        %v265 = vpack.c.bf16 %v231, %v231
        %v266 = vpack.c.bf16 %v232, %v232
        %v267 = vunpack.c.l.bf16 %v265
        %v268 = vunpack.c.l.bf16 %v266
        %v269 = vsub.f32 %v231, %v267
        %v270 = vsub.f32 %v232, %v268
        %v271 = vpack.c.bf16 %v269, %v269
        %v272 = vpack.c.bf16 %v270, %v270
        %v305 = vunpack.c.l.b16 %v233
        %v306 = vunpack.c.h.b16 %v233
        %v307 = vunpack.c.l.b16 %v234
        %v308 = vunpack.c.h.b16 %v234
        %v309 = vunpack.c.l.b16 %v235
        %v310 = vunpack.c.h.b16 %v235
        %v311 = vunpack.c.l.b16 %v236
        %v312 = vunpack.c.h.b16 %v236
        %v313 = vunpack.c.l.b16 %v237
        %v314 = vunpack.c.h.b16 %v237
        %v315 = vunpack.c.l.b16 %v238
        %v316 = vunpack.c.h.b16 %v238
        %v317 = vunpack.c.l.b16 %v239
        %v318 = vunpack.c.h.b16 %v239
        %v319 = vunpack.c.l.b16 %v240
        %v320 = vunpack.c.h.b16 %v240
        %v321 = vunpack.c.l.b16 %v241
        %v322 = vunpack.c.h.b16 %v241
        %v323 = vunpack.c.l.b16 %v242
        %v324 = vunpack.c.h.b16 %v242
        %v325 = vunpack.c.l.b16 %v243
        %v326 = vunpack.c.h.b16 %v243
        %v327 = vunpack.c.l.b16 %v244
        %v328 = vunpack.c.h.b16 %v244
        %v329 = vunpack.c.l.b16 %v245
        %v330 = vunpack.c.h.b16 %v245
        %v331 = vunpack.c.l.b16 %v246
        %v332 = vunpack.c.h.b16 %v246
        %v333 = vunpack.c.l.b16 %v247
        %v334 = vunpack.c.h.b16 %v247
        %v335 = vunpack.c.l.b16 %v248
        %v336 = vunpack.c.h.b16 %v248
        %v337 = vunpack.c.l.b16 %v249
        %v338 = vunpack.c.h.b16 %v249
        %v339 = vunpack.c.l.b16 %v250
        %v340 = vunpack.c.h.b16 %v250
        %v341 = vunpack.c.l.b16 %v251
        %v342 = vunpack.c.h.b16 %v251
        %v343 = vunpack.c.l.b16 %v252
        %v344 = vunpack.c.h.b16 %v252
        %v345 = vunpack.c.l.b16 %v253
        %v346 = vunpack.c.h.b16 %v253
        %v347 = vunpack.c.l.b16 %v254
        %v348 = vunpack.c.h.b16 %v254
        %v349 = vunpack.c.l.b16 %v255
        %v350 = vunpack.c.h.b16 %v255
        %v351 = vunpack.c.l.b16 %v256
        %v352 = vunpack.c.h.b16 %v256
        %v353 = vunpack.c.l.b16 %v257
        %v354 = vunpack.c.h.b16 %v257
        %v355 = vunpack.c.l.b16 %v258
        %v356 = vunpack.c.h.b16 %v258
        %v357 = vunpack.c.l.b16 %v259
        %v358 = vunpack.c.h.b16 %v259
        %v359 = vunpack.c.l.b16 %v260
        %v360 = vunpack.c.h.b16 %v260
        %v361 = vunpack.c.l.b16 %v261
        %v362 = vunpack.c.h.b16 %v261
        %v363 = vunpack.c.l.b16 %v262
        %v364 = vunpack.c.h.b16 %v262
        %v365 = vunpack.c.l.b16 %v263
        %v366 = vunpack.c.h.b16 %v263
        %v367 = vunpack.c.l.b16 %v264
        %v368 = vunpack.c.h.b16 %v264
        %v369 = vpack.c.b16 %v307, %v305
        %v370 = vpack.c.b16 %v308, %v306
        %v371 = vpack.c.b16 %v311, %v309
        %v372 = vpack.c.b16 %v312, %v310
        %v373 = vpack.c.b16 %v315, %v313
        %v374 = vpack.c.b16 %v316, %v314
        %v375 = vpack.c.b16 %v319, %v317
        %v376 = vpack.c.b16 %v320, %v318
        %v377 = vpack.c.b16 %v323, %v321
        %v378 = vpack.c.b16 %v324, %v322
        %v379 = vpack.c.b16 %v327, %v325
        %v380 = vpack.c.b16 %v328, %v326
        %v381 = vpack.c.b16 %v331, %v329
        %v382 = vpack.c.b16 %v332, %v330
        %v383 = vpack.c.b16 %v335, %v333
        %v384 = vpack.c.b16 %v336, %v334
        %v385 = vpack.c.b16 %v339, %v337
        %v386 = vpack.c.b16 %v340, %v338
        %v387 = vpack.c.b16 %v343, %v341
        %v388 = vpack.c.b16 %v344, %v342
        %v389 = vpack.c.b16 %v347, %v345
        %v390 = vpack.c.b16 %v348, %v346
        %v391 = vpack.c.b16 %v351, %v349
        %v392 = vpack.c.b16 %v352, %v350
        %v393 = vpack.c.b16 %v355, %v353
        %v394 = vpack.c.b16 %v356, %v354
        %v395 = vpack.c.b16 %v359, %v357
        %v396 = vpack.c.b16 %v360, %v358
        %v397 = vpack.c.b16 %v363, %v361
        %v398 = vpack.c.b16 %v364, %v362
        %v399 = vpack.c.b16 %v367, %v365
        %v400 = vpack.c.b16 %v368, %v366
        %433 = vmatprep.subr.bf16.mxu0 %v370
        %434 = vmatpush1.bf16.msra.mxu0 %v369
        %435 = vmatprep.subr.bf16.mxu0 %v372
        %436 = vmatpush1.bf16.msra.mxu0 %v371
        %437 = vmatprep.subr.bf16.mxu0 %v374
        %438 = vmatpush1.bf16.msra.mxu0 %v373
        %439 = vmatprep.subr.bf16.mxu0 %v376
        %440 = vmatpush1.bf16.msra.mxu0 %v375
        %441 = vmatprep.subr.bf16.mxu0 %v378
        %442 = vmatpush1.bf16.msra.mxu0 %v377
        %443 = vmatprep.subr.bf16.mxu0 %v380
        %444 = vmatpush1.bf16.msra.mxu0 %v379
        %445 = vmatprep.subr.bf16.mxu0 %v382
        %446 = vmatpush1.bf16.msra.mxu0 %v381
        %447 = vmatprep.subr.bf16.mxu0 %v384
        %448 = vmatpush1.bf16.msra.mxu0 %v383
        %449 = vmatprep.subr.bf16.mxu0 %v386
        %450 = vmatpush1.bf16.msra.mxu0 %v385
        %451 = vmatprep.subr.bf16.mxu0 %v388
        %452 = vmatpush1.bf16.msra.mxu0 %v387
        %453 = vmatprep.subr.bf16.mxu0 %v390
        %454 = vmatpush1.bf16.msra.mxu0 %v389
        %455 = vmatprep.subr.bf16.mxu0 %v392
        %456 = vmatpush1.bf16.msra.mxu0 %v391
        %457 = vmatprep.subr.bf16.mxu0 %v394
        %458 = vmatpush1.bf16.msra.mxu0 %v393
        %459 = vmatprep.subr.bf16.mxu0 %v396
        %460 = vmatpush1.bf16.msra.mxu0 %v395
        %461 = vmatprep.subr.bf16.mxu0 %v398
        %462 = vmatpush1.bf16.msra.mxu0 %v397
        %463 = vmatprep.subr.bf16.mxu0 %v400
        %464 = vmatpush1.bf16.msra.mxu0 %v399
        %465 = vmatprep.mubr.bf16.mxu0 %v272
        %466 = vmatmul.mubr.bf16.gmra.mrb[0].mxu0 %v271
        %v467 = vpop.f32.mrb[0].mxu0
        %v468 = vadd.f32 0.0, %v467
        %v469 = vpop.f32.mrb[0].mxu0
        %v470 = vadd.f32 0.0, %v469
        %v471 = vpop.f32.mrb[0].mxu0
        %v472 = vpop.f32.mrb[0].mxu0
        %473 = vdwg.mxu0
        %474 = vmatprep.subr.bf16.mxu0 %v370
        %475 = vmatpush1.bf16.msra.mxu0 %v369
        %476 = vmatprep.subr.bf16.mxu0 %v372
        %477 = vmatpush1.bf16.msra.mxu0 %v371
        %478 = vmatprep.subr.bf16.mxu0 %v374
        %479 = vmatpush1.bf16.msra.mxu0 %v373
        %480 = vmatprep.subr.bf16.mxu0 %v376
        %481 = vmatpush1.bf16.msra.mxu0 %v375
        %482 = vmatprep.subr.bf16.mxu0 %v378
        %483 = vmatpush1.bf16.msra.mxu0 %v377
        %484 = vmatprep.subr.bf16.mxu0 %v380
        %485 = vmatpush1.bf16.msra.mxu0 %v379
        %486 = vmatprep.subr.bf16.mxu0 %v382
        %487 = vmatpush1.bf16.msra.mxu0 %v381
        %488 = vmatprep.subr.bf16.mxu0 %v384
        %489 = vmatpush1.bf16.msra.mxu0 %v383
        %490 = vmatprep.subr.bf16.mxu0 %v386
        %491 = vmatpush1.bf16.msra.mxu0 %v385
        %492 = vmatprep.subr.bf16.mxu0 %v388
        %493 = vmatpush1.bf16.msra.mxu0 %v387
        %494 = vmatprep.subr.bf16.mxu0 %v390
        %495 = vmatpush1.bf16.msra.mxu0 %v389
        %496 = vmatprep.subr.bf16.mxu0 %v392
        %497 = vmatpush1.bf16.msra.mxu0 %v391
        %498 = vmatprep.subr.bf16.mxu0 %v394
        %499 = vmatpush1.bf16.msra.mxu0 %v393
        %500 = vmatprep.subr.bf16.mxu0 %v396
        %501 = vmatpush1.bf16.msra.mxu0 %v395
        %502 = vmatprep.subr.bf16.mxu0 %v398
        %503 = vmatpush1.bf16.msra.mxu0 %v397
        %504 = vmatprep.subr.bf16.mxu0 %v400
        %505 = vmatpush1.bf16.msra.mxu0 %v399
        %506 = vmatprep.mubr.bf16.mxu0 %v266
        %507 = vmatmul.mubr.bf16.gmra.mrb[0].mxu0 %v265
        %v508 = vpop.f32.mrb[0].mxu0
        %v509 = vadd.f32 %v468, %v508
        %v510 = vpop.f32.mrb[0].mxu0
        %v511 = vadd.f32 %v470, %v510
        %v512 = vpop.f32.mrb[0].mxu0
        %v513 = vpop.f32.mrb[0].mxu0
        %514 = vdwg.mxu0
        %v515 = vmul.f32 %v509, 0.03125
        %v516 = vmul.f32 %v511, 0.03125
        %v517 = vsub.f32 %v231, %v515
        %v518 = vsub.f32 %v232, %v516
        %v519 = vmul.f32 %v517, %v517
        %v520 = vmul.f32 %v518, %v518
        %v521 = vpack.c.bf16 %v519, %v519
        %v522 = vpack.c.bf16 %v520, %v520
        %v523 = vunpack.c.l.bf16 %v521
        %v524 = vunpack.c.l.bf16 %v522
        %v525 = vsub.f32 %v519, %v523
        %v526 = vsub.f32 %v520, %v524
        %v527 = vpack.c.bf16 %v525, %v525
        %v528 = vpack.c.bf16 %v526, %v526
        %529 = vmatprep.subr.bf16.mxu0 %v370
        %530 = vmatpush1.bf16.msra.mxu0 %v369
        %531 = vmatprep.subr.bf16.mxu0 %v372
        %532 = vmatpush1.bf16.msra.mxu0 %v371
        %533 = vmatprep.subr.bf16.mxu0 %v374
        %534 = vmatpush1.bf16.msra.mxu0 %v373
        %535 = vmatprep.subr.bf16.mxu0 %v376
        %536 = vmatpush1.bf16.msra.mxu0 %v375
        %537 = vmatprep.subr.bf16.mxu0 %v378
        %538 = vmatpush1.bf16.msra.mxu0 %v377
        %539 = vmatprep.subr.bf16.mxu0 %v380
        %540 = vmatpush1.bf16.msra.mxu0 %v379
        %541 = vmatprep.subr.bf16.mxu0 %v382
        %542 = vmatpush1.bf16.msra.mxu0 %v381
        %543 = vmatprep.subr.bf16.mxu0 %v384
        %544 = vmatpush1.bf16.msra.mxu0 %v383
        %545 = vmatprep.subr.bf16.mxu0 %v386
        %546 = vmatpush1.bf16.msra.mxu0 %v385
        %547 = vmatprep.subr.bf16.mxu0 %v388
        %548 = vmatpush1.bf16.msra.mxu0 %v387
        %549 = vmatprep.subr.bf16.mxu0 %v390
        %550 = vmatpush1.bf16.msra.mxu0 %v389
        %551 = vmatprep.subr.bf16.mxu0 %v392
        %552 = vmatpush1.bf16.msra.mxu0 %v391
        %553 = vmatprep.subr.bf16.mxu0 %v394
        %554 = vmatpush1.bf16.msra.mxu0 %v393
        %555 = vmatprep.subr.bf16.mxu0 %v396
        %556 = vmatpush1.bf16.msra.mxu0 %v395
        %557 = vmatprep.subr.bf16.mxu0 %v398
        %558 = vmatpush1.bf16.msra.mxu0 %v397
        %559 = vmatprep.subr.bf16.mxu0 %v400
        %560 = vmatpush1.bf16.msra.mxu0 %v399
        %561 = vmatprep.mubr.bf16.mxu0 %v528
        %562 = vmatmul.mubr.bf16.gmra.mrb[0].mxu0 %v527
        %v563 = vpop.f32.mrb[0].mxu0
        %v564 = vadd.f32 0.0, %v563
        %v565 = vpop.f32.mrb[0].mxu0
        %v566 = vadd.f32 0.0, %v565
        %v567 = vpop.f32.mrb[0].mxu0
        %v568 = vpop.f32.mrb[0].mxu0
        %569 = vdwg.mxu0
        %570 = vmatprep.subr.bf16.mxu0 %v370
        %571 = vmatpush1.bf16.msra.mxu0 %v369
        %572 = vmatprep.subr.bf16.mxu0 %v372
        %573 = vmatpush1.bf16.msra.mxu0 %v371
        %574 = vmatprep.subr.bf16.mxu0 %v374
        %575 = vmatpush1.bf16.msra.mxu0 %v373
        %576 = vmatprep.subr.bf16.mxu0 %v376
        %577 = vmatpush1.bf16.msra.mxu0 %v375
        %578 = vmatprep.subr.bf16.mxu0 %v378
        %579 = vmatpush1.bf16.msra.mxu0 %v377
        %580 = vmatprep.subr.bf16.mxu0 %v380
        %581 = vmatpush1.bf16.msra.mxu0 %v379
        %582 = vmatprep.subr.bf16.mxu0 %v382
        %583 = vmatpush1.bf16.msra.mxu0 %v381
        %584 = vmatprep.subr.bf16.mxu0 %v384
        %585 = vmatpush1.bf16.msra.mxu0 %v383
        %586 = vmatprep.subr.bf16.mxu0 %v386
        %587 = vmatpush1.bf16.msra.mxu0 %v385
        %588 = vmatprep.subr.bf16.mxu0 %v388
        %589 = vmatpush1.bf16.msra.mxu0 %v387
        %590 = vmatprep.subr.bf16.mxu0 %v390
        %591 = vmatpush1.bf16.msra.mxu0 %v389
        %592 = vmatprep.subr.bf16.mxu0 %v392
        %593 = vmatpush1.bf16.msra.mxu0 %v391
        %594 = vmatprep.subr.bf16.mxu0 %v394
        %595 = vmatpush1.bf16.msra.mxu0 %v393
        %596 = vmatprep.subr.bf16.mxu0 %v396
        %597 = vmatpush1.bf16.msra.mxu0 %v395
        %598 = vmatprep.subr.bf16.mxu0 %v398
        %599 = vmatpush1.bf16.msra.mxu0 %v397
        %600 = vmatprep.subr.bf16.mxu0 %v400
        %601 = vmatpush1.bf16.msra.mxu0 %v399
        %602 = vmatprep.mubr.bf16.mxu0 %v522
        %603 = vmatmul.mubr.bf16.gmra.mrb[0].mxu0 %v521
        %v604 = vpop.f32.mrb[0].mxu0
        %v605 = vadd.f32 %v564, %v604
        %v606 = vpop.f32.mrb[0].mxu0
        %v607 = vadd.f32 %v566, %v606
        %v608 = vpop.f32.mrb[0].mxu0
        %v609 = vpop.f32.mrb[0].mxu0
        %610 = vdwg.mxu0
        %v611 = vmul.f32 %v605, 0.03125
        %v612 = vmul.f32 %v607, 0.03125
        %v613 = vadd.f32 %v611, 1e-05
        %v614 = vadd.f32 %v612, 1e-05
        %v615 = vrsqrt.pop %v613
        %v616 = vrsqrt.pop %v614
        %v617 = vmul.f32 %v517, %v615
        %v618 = vmul.f32 %v518, %v616
        %v619 = vld [vmem:[%s2] sm:$0x3]
        %v621 = vlaneseq
        %v622 = vshrl.u32 %v621, 7
        %v623 = vsub.s32 0, %v622
        %v624 = vrot.slane %v619, %v623
        %v625 = vlaneseq
        %v626 = vshrl.u32 %v625, 7
        %v627 = vsub.s32 1, %v626
        %v628 = vrot.slane %v619, %v627
        %v631 = vmul.f32 %v617, %v624
        %v632 = vmul.f32 %v618, %v628
        %v633 = vld [vmem:[%s3] sm:$0x3]
        %v635 = vlaneseq
        %v636 = vshrl.u32 %v635, 7
        %v637 = vsub.s32 0, %v636
        %v638 = vrot.slane %v633, %v637
        %v639 = vlaneseq
        %v640 = vshrl.u32 %v639, 7
        %v641 = vsub.s32 1, %v640
        %v642 = vrot.slane %v633, %v641
        %v645 = vadd.f32 %v631, %v638
        %v646 = vadd.f32 %v632, %v642
        %v647 = vmax.f32 %v645, 0.0
        %v648 = vmax.f32 %v646, 0.0
        %v649 = vlaneseq
        %v650 = vshrl.u32 %v649, 7
        %v651 = vlaneseq
        %v652 = vand.u32 %v651, 127
        %v653 = vadd.s32 %v652, 128
        %s654 = smul.u32 %s24, 8
        %v655 = vstv %s654
        %v656 = vadd.s32 %v655, %v650
        %v657 = vmul.u32 %v656, 256
        %v658 = vadd.s32 %v657, %v652
        %v659 = vadd.s32 %v657, %v653
        %s660 = sld [smem:[#allocation3]]
        %s661 = smul.u32 %s660, 2654435769
        %v662 = vstv %s661
        %v663 = vxor.u32 %v658, %v662
        %v664 = vxor.u32 %v659, %v662
        %v665 = vmul.u32 %v663, 2246822507
        %v666 = vmul.u32 %v664, 2246822507
        %v667 = vshrl.u32 %v665, 15
        %v668 = vshrl.u32 %v666, 15
        %v669 = vxor.u32 %v665, %v667
        %v670 = vxor.u32 %v666, %v668
        %v671 = vmul.u32 %v669, 3266489909
        %v672 = vmul.u32 %v670, 3266489909
        %v673 = vshrl.u32 %v671, 13
        %v674 = vshrl.u32 %v672, 13
        %v675 = vxor.u32 %v671, %v673
        %v676 = vxor.u32 %v672, %v674
        %v677 = vxor.u32 %v675, 2147483648
        %v678 = vxor.u32 %v676, 2147483648
        %vm679 = vcmp.ge.s32.totalorder %v677, 0
        %vm680 = vcmp.ge.s32.totalorder %v678, 0
        %v681 = vsel %vm679, %v647, 0.0
        %v682 = vsel %vm680, %v648, 0.0
        %683 = vst [vmem:[%s230] sm:$0xff] %v681
        %684 = vst [vmem:[%s230 + $0x8] sm:$0xff] %v682
        %s685 = sand.u32 %s121, 1
        %s686 = scalar_lea.sflag [#allocation6], %s685
        %s687 = sand.u32 %s121, 1
        %s688 = smul.addr %s687, 16
        %s689 = scalar_lea.vmem [#allocation9], %s688
        // Predicated region
        $region45: #{tpu_custom_call.1} parent=35 // pred_check
          %p690 = pneg %p131
        $region46: #{tpu_custom_call.1} parent=35 // pred_check_branch
          %692 = sbr.rel (%p690) target = $region48
        $region47: #{tpu_custom_call.1} parent=35 // pred_region
          %s694 = ssub.s32 256, 256
          %695 = vsyncadd %s686, %s694
          %s696 = smul.addr %s24, 2
          %s697 = smul.addr %s696, 128
          %s698 = scalar_lea.hbm %s5, %s697
          %s700 = sshll.u32 %s689, 4
          %s701 = int_to_ptr.vmem [resolvable:$true] %s700
          %703 = dma.vmem_to_hbm [thread:$0]  %s701, 256, %s698, %s686
        $region48: #{tpu_custom_call.1} parent=35 // pred_fallthru
          _
      $region36: #{tpu_custom_call.1} parent=5 // pred_fallthru
        _
      %p704 = scmp.le.s32.totalorder 2, %s19
      // Predicated region
      $region49: #{tpu_custom_call.1} parent=5 // pred_check
        %p705 = pneg %p704
      $region50: #{tpu_custom_call.1} parent=5 // pred_check_branch
        %707 = sbr.rel (%p705) target = $region52
      $region51: #{tpu_custom_call.1} parent=5 // pred_region
        %s708 = ssub.s32 %s19, 2
        // Predicated region
        $region53: #{tpu_custom_call.1} parent=51 // pred_check
          %p709 = pneg %p137
        $region54: #{tpu_custom_call.1} parent=51 // pred_check_branch
          %711 = sbr.rel (%p709) target = $region56
        $region55: #{tpu_custom_call.1} parent=51 // pred_region
          %s712 = sand.u32 %s122, 1
          %s713 = scalar_lea.sflag [#allocation6], %s712
          %s714 = sand.u32 %s122, 1
          %s715 = smul.addr %s714, 16
          %s716 = scalar_lea.vmem [#allocation9], %s715
          %717 = dma.done %s713, 256
        $region56: #{tpu_custom_call.1} parent=51 // pred_fallthru
          _
      $region52: #{tpu_custom_call.1} parent=5 // pred_fallthru
        _
    $region6: #{tpu_custom_call.1} parent=1 // loop_footer
      %s23 = sadd.s32 1, %s19
    $region7: #{tpu_custom_call.1} parent=1 // loop_footer_branch
      %18 = sbr.rel target = $region3
    $region8: #{tpu_custom_call.1} parent=1 // loop_exit
      _
    %718 = vsyncpa [#allocation5], 1
    %s719 = scalar_lea.sflag [#allocation5], 1
    %720 = vsyncpa %s719, 1
    %721 = vsyncpa [#allocation8], 1
    %s722 = scalar_lea.sflag [#allocation8], 1
    %723 = vsyncpa %s722, 1
    %724 = vsyncpa [#allocation6], 1
    %s725 = scalar_lea.sflag [#allocation6], 1
    %726 = vsyncpa %s725, 1

</llo_original>
